<compile_context>
chip_gen: v6e
topology: v6e:2x2x1
jax: 0.10.0
libtpu: 0.0.40
codegen_flags: <defaults>
</compile_context>

<pallas_src>
import functools
import math

import jax
import jax.numpy as jnp
from jax import lax
from jax.experimental import pallas as pl
from jax.experimental.pallas import tpu as pltpu

LANE = 128
_NEG_INF = -1e30  # finite "masked" value: avoids inf-inf NaNs in online softmax


def _round_up(v, m):
    return (v + m - 1) // m * m


def _tpu_flavor():
    """Crude generation probe: 256-wide MXU / bf16 EUP on v6e and newer."""
    try:
        kind = jax.devices()[0].device_kind.lower()
    except Exception:  # pragma: no cover - defensive
        kind = ""
    old = any(t in kind for t in ("v2", "v3", "v4", "v5"))
    return {"mxu_256": not old, "bf16_eup": not old}


# ----------------------------------------------------------------------------
# Pallas kernel 1: fused Q/K/V projection (one wide matmul per node tile)
# ----------------------------------------------------------------------------
def _qkv_proj_kernel(x_ref, w_ref, b_ref, q_ref, k_ref, v_ref, *, h_pad, scale):
    xw = jnp.dot(x_ref[...], w_ref[...],
                 preferred_element_type=jnp.float32) + b_ref[...]
    # Slices land on 128-aligned lane boundaries (h_pad is a multiple of 128).
    q_ref[...] = (xw[:, 0:h_pad] * scale).astype(q_ref.dtype)   # fold 1/sqrt(d)
    k_ref[...] = xw[:, h_pad:2 * h_pad].astype(k_ref.dtype)
    v_ref[...] = xw[:, 2 * h_pad:3 * h_pad].astype(v_ref.dtype)


def qkv_projection(x, layer, *, tp, scale):
    n_pad, f_pad = x.shape
    h_pad = layer["h_pad"]
    kernel = functools.partial(_qkv_proj_kernel, h_pad=h_pad, scale=scale)
    cost = pl.CostEstimate(
        flops=int(2 * n_pad * f_pad * 3 * h_pad),
        transcendentals=0,
        bytes_accessed=int(n_pad * f_pad * 2 + f_pad * 3 * h_pad * 2
                           + 3 * n_pad * h_pad * 2),
    )
    return pl.pallas_call(
        kernel,
        out_shape=tuple(jax.ShapeDtypeStruct((n_pad, h_pad), jnp.bfloat16)
                        for _ in range(3)),
        grid=(n_pad // tp,),
        in_specs=[
            pl.BlockSpec((tp, f_pad), lambda i: (i, 0)),          # x rows
            pl.BlockSpec((f_pad, 3 * h_pad), lambda i: (0, 0)),   # wq||wk||wv
            pl.BlockSpec((1, 3 * h_pad), lambda i: (0, 0)),       # bq||bk||bv
        ],
        out_specs=tuple(pl.BlockSpec((tp, h_pad), lambda i: (i, 0))
                        for _ in range(3)),
        compiler_params=pltpu.CompilerParams(
            dimension_semantics=("parallel",)),
        cost_estimate=cost,
    )(x, layer["wqkv"], layer["bqkv"])


# ----------------------------------------------------------------------------
# Pallas kernel 2: fused masked attention + out-proj (+ReLU), online softmax
# ----------------------------------------------------------------------------
def _attn_kernel(occ_ref,                       # scalar-prefetch (SMEM)
                 q_ref, k_ref, v_ref, adj_ref, wo_ref, bo_ref,
                 out_ref,
                 m_scr, l_scr, acc_scr,
                 *, apply_relu, exp_dtype):
    qi = pl.program_id(0)
    ki = pl.program_id(1)

    # --- init (once per q tile): reset online-softmax state -----------------
    @pl.when(ki == 0)
    def _init():
        m_scr[...] = jnp.full_like(m_scr, _NEG_INF)
        l_scr[...] = jnp.zeros_like(l_scr)
        acc_scr[...] = jnp.zeros_like(acc_scr)

    # --- per kv tile: skip entirely if no edges in this (qi, ki) block ------
    @pl.when(occ_ref[qi, ki] != 0)
    def _update():
        # [TQ, TK] scores: contract the feature axis of q and k (no k.T).
        scores = lax.dot_general(q_ref[...], k_ref[...],
                                 (((1,), (1,)), ((), ())),
                                 preferred_element_type=jnp.float32)
        scores = jnp.where(adj_ref[...] > 0, scores, _NEG_INF)

        m_prev = m_scr[...]
        m_new = jnp.maximum(m_prev, jnp.max(scores, axis=-1, keepdims=True))
        alpha = jnp.exp(m_prev - m_new)
        # bf16 exp on v6e/v7x (bf16 EUP), f32 elsewhere; m/l/acc stay f32.
        p = jnp.exp((scores - m_new).astype(exp_dtype))
        l_scr[...] = alpha * l_scr[...] + jnp.sum(
            p.astype(jnp.float32), axis=-1, keepdims=True)
        acc_scr[...] = alpha * acc_scr[...] + jnp.dot(
            p.astype(jnp.bfloat16), v_ref[...],
            preferred_element_type=jnp.float32)
        m_scr[...] = m_new

    # --- finalize (last kv tile): normalize, output projection, fused ReLU --
    @pl.when(ki == pl.num_programs(1) - 1)
    def _finalize():
        h = (acc_scr[...] * pl.reciprocal(l_scr[...], approx=True)
             ).astype(jnp.bfloat16)
        out = jnp.dot(h, wo_ref[...],
                      preferred_element_type=jnp.float32) + bo_ref[...]
        if apply_relu:
            out = jnp.maximum(out, 0.0)
        out_ref[...] = out.astype(out_ref.dtype)


def hgat_attention(q, k, v, adj, occ, layer, *, apply_relu, out_dtype,
                   exp_dtype, tq, tk):
    n_pad, h_pad = q.shape
    o_pad = layer["wo"].shape[1]
    assert n_pad % tq == 0 and n_pad % tk == 0
    nq, nk = n_pad // tq, n_pad // tk

    kernel = functools.partial(_attn_kernel, apply_relu=apply_relu,
                               exp_dtype=exp_dtype)
    out_bytes = jnp.dtype(out_dtype).itemsize
    cost = pl.CostEstimate(
        flops=int(4 * n_pad * n_pad * h_pad + 2 * n_pad * h_pad * o_pad),
        transcendentals=int(n_pad * n_pad + n_pad * nk),
        bytes_accessed=int(n_pad * n_pad                      # int8 adjacency
                           + 3 * n_pad * h_pad * 2            # bf16 q/k/v
                           + n_pad * o_pad * out_bytes        # output
                           + h_pad * o_pad * 2),              # out-proj weight
    )

    return pl.pallas_call(
        kernel,
        out_shape=jax.ShapeDtypeStruct((n_pad, o_pad), out_dtype),
        grid_spec=pltpu.PrefetchScalarGridSpec(
            num_scalar_prefetch=1,
            grid=(nq, nk),
            in_specs=[
                pl.BlockSpec((tq, h_pad), lambda qi, ki, occ_r: (qi, 0)),  # q
                pl.BlockSpec((tk, h_pad), lambda qi, ki, occ_r: (ki, 0)),  # k
                pl.BlockSpec((tk, h_pad), lambda qi, ki, occ_r: (ki, 0)),  # v
                pl.BlockSpec((tq, tk), lambda qi, ki, occ_r: (qi, ki)),    # adj
                pl.BlockSpec((h_pad, o_pad), lambda qi, ki, occ_r: (0, 0)),
                pl.BlockSpec((1, o_pad), lambda qi, ki, occ_r: (0, 0)),
            ],
            out_specs=pl.BlockSpec((tq, o_pad), lambda qi, ki, occ_r: (qi, 0)),
            scratch_shapes=[
                pltpu.VMEM((tq, 1), jnp.float32),       # running max
                pltpu.VMEM((tq, 1), jnp.float32),       # running denom
                pltpu.VMEM((tq, h_pad), jnp.float32),   # output accumulator
            ],
        ),
        compiler_params=pltpu.CompilerParams(
            dimension_semantics=("parallel", "arbitrary"),
            vmem_limit_bytes=32 * 1024 * 1024),         # safe on v7x's 64 MiB
        cost_estimate=cost,
    )(occ, q, k, v, adj, layer["wo"], layer["bo"])


# ----------------------------------------------------------------------------
# Parameters (xavier_uniform / zero bias, as in reset_parameters), lane-padded
# ----------------------------------------------------------------------------
def _xavier_uniform(key, fan_in, fan_out):
    limit = math.sqrt(6.0 / (fan_in + fan_out))
    # Stored [fan_in, fan_out] (transpose of torch's [out, in]) for x @ W.
    return jax.random.uniform(key, (fan_in, fan_out), jnp.float32, -limit, limit)


def _pad2(w, rows, cols):
    return jnp.pad(w, ((0, rows - w.shape[0]), (0, cols - w.shape[1])))


def make_layer_params(key, in_features, out_features, num_heads=1, concat=True):
    h = out_features * num_heads
    proj_in = h if concat else out_features
    # TODO(synk): num_heads > 1 is collapsed into one fused head (matches the
    #             single-head reference used here); flag before using heads>1.
    keys = jax.random.split(key, 4)
    wq = _xavier_uniform(keys[0], in_features, h)
    wk = _xavier_uniform(keys[1], in_features, h)
    wv = _xavier_uniform(keys[2], in_features, h)
    wo = _xavier_uniform(keys[3], proj_in, out_features)

    fin_p = _round_up(in_features, LANE)
    h_p = _round_up(h, LANE)
    pin_p = _round_up(proj_in, LANE)
    o_p = _round_up(out_features, LANE)

    wqkv = jnp.concatenate(
        [_pad2(wq, fin_p, h_p), _pad2(wk, fin_p, h_p), _pad2(wv, fin_p, h_p)],
        axis=1)

    return dict(
        wqkv=wqkv.astype(jnp.bfloat16),                 # [fin_p, 3*h_p]
        bqkv=jnp.zeros((1, 3 * h_p), jnp.float32),
        wo=_pad2(wo, pin_p, o_p).astype(jnp.bfloat16),
        bo=jnp.zeros((1, o_p), jnp.float32),
        head_dim=h,                  # true (unpadded) width for 1/sqrt(d)
        h_pad=h_p,
        out_features=out_features,   # true output width for final slice
    )


def make_hgat_params(key, in_features, hidden_features, out_features,
                     num_layers=2, num_heads=1):
    params = []
    curr_in = in_features
    keys = jax.random.split(key, num_layers)
    for i in range(num_layers - 1):
        params.append(make_layer_params(keys[i], curr_in, hidden_features,
                                        num_heads=num_heads, concat=True))
        curr_in = hidden_features
    params.append(make_layer_params(keys[-1], curr_in, out_features,
                                    num_heads=1, concat=False))
    return params


# ----------------------------------------------------------------------------
# Graph mask + full forward
# ----------------------------------------------------------------------------
def build_adjacency(edge_index, padded_nodes):
    """int8 [Np, Np] adjacency: 1 on edges (dst attends over src) + self-loops."""
    src, dst = edge_index[0], edge_index[1]
    adj = jnp.zeros((padded_nodes, padded_nodes), dtype=jnp.int8)
    adj = adj.at[dst, src].set(1)
    diag = jnp.arange(padded_nodes)
    adj = adj.at[diag, diag].set(1)     # self-loops keep every row non-empty
    return adj


def hyperbolic_gat_forward(x, edge_index, params, *, tq=None, tk=None):
    n, fin = x.shape
    flavor = _tpu_flavor()
    if tq is None or tk is None:
        big = flavor["mxu_256"] and _round_up(n, 128) >= 512
        tile = 256 if big else 128      # 256 fills the v6e/v7x MXU; 128 on v5e
        tq = tq or tile
        tk = tk or tile
    exp_dtype = jnp.bfloat16 if flavor["bf16_eup"] else jnp.float32

    n_pad = _round_up(n, max(tq, tk))
    fin_pad = params[0]["wqkv"].shape[0]

    h = jnp.pad(x, ((0, n_pad - n), (0, fin_pad - fin))).astype(jnp.bfloat16)
    adj = build_adjacency(edge_index, n_pad)

    # Per-(qi, ki) tile occupancy table for the block-skip (scalar prefetch).
    nq, nk = n_pad // tq, n_pad // tk
    occ = jnp.any(adj.reshape(nq, tq, nk, tk) != 0, axis=(1, 3)
                  ).astype(jnp.int32)

    num_layers = len(params)
    for i, layer in enumerate(params):
        is_last = (i == num_layers - 1)
        scale = 1.0 / math.sqrt(float(layer["head_dim"]))
        q, k, v = qkv_projection(h, layer, tp=tq, scale=scale)
        h = hgat_attention(q, k, v, adj, occ, layer,
                           apply_relu=not is_last,          # fused ReLU (p=0 dropout)
                           out_dtype=jnp.float32 if is_last else jnp.bfloat16,
                           exp_dtype=exp_dtype, tq=tq, tk=tk)
    return h[:n, :params[-1]["out_features"]]


# ----------------------------------------------------------------------------
# Pure-JAX reference (for numerical sanity check)
# ----------------------------------------------------------------------------
def _reference_forward(x, edge_index, params):
    n, _ = x.shape
    adj = jnp.zeros((n, n), dtype=bool)
    adj = adj.at[edge_index[1], edge_index[0]].set(True)
    adj = adj | jnp.eye(n, dtype=bool)
    h = x.astype(jnp.float32)
    for i, layer in enumerate(params):
        f_in = h.shape[1]
        hd = layer["head_dim"]
        hp = layer["h_pad"]
        od = layer["out_features"]
        wqkv = layer["wqkv"].astype(jnp.float32)
        wq = wqkv[:f_in, 0:hd]
        wk = wqkv[:f_in, hp:hp + hd]
        wv = wqkv[:f_in, 2 * hp:2 * hp + hd]
        wo = layer["wo"].astype(jnp.float32)[:hd, :od]
        q, k, v = h @ wq, h @ wk, h @ wv            # biases are zero-init
        s = (q @ k.T) / math.sqrt(float(hd))
        s = jnp.where(adj, s, -1e9)
        a = jax.nn.softmax(s, axis=-1)
        o = (a @ v) @ wo
        if i < len(params) - 1:
            o = jax.nn.relu(o)
        h = o
    return h


# ----------------------------------------------------------------------------
# Demo
# ----------------------------------------------------------------------------
if __name__ == "__main__":
    key = jax.random.PRNGKey(0)
    k_x, k_params = jax.random.split(key)

    num_nodes = 200            # pads to 256 -> grid (2, 2): multi-tile softmax
    in_features = 16
    hidden_features = 32
    out_features = 16
    num_layers = 2
    num_heads = 1

    x = jax.random.normal(k_x, (num_nodes, in_features), jnp.float32)

    # Bidirectional ring graph, edge_index [2, E]
    src = jnp.arange(num_nodes, dtype=jnp.int32)
    dst = (src + 1) % num_nodes
    edge_index = jnp.stack(
        [jnp.concatenate([src, dst]), jnp.concatenate([dst, src])], axis=0)

    params = make_hgat_params(k_params, in_features, hidden_features,
                              out_features, num_layers=num_layers,
                              num_heads=num_heads)

    out = hyperbolic_gat_forward(x, edge_index, params)
    out = jax.block_until_ready(out)

    assert out.shape == (num_nodes, out_features)
    assert bool(jnp.all(jnp.isfinite(out)))

    ref = _reference_forward(x, edge_index, params)
    assert bool(jnp.allclose(out, ref, rtol=0.1, atol=0.1)), \
        float(jnp.max(jnp.abs(out - ref)))

    print("KERNEL_OK")
</pallas_src>

<mosaic_0001>
module attributes {stable_mosaic.version = 11 : i64} {
  func.func @_qkv_proj_kernel(%arg0: i32, %arg1: memref<128x128xbf16, #tpu.memory_space<vmem>>, %arg2: memref<128x384xbf16, #tpu.memory_space<vmem>>, %arg3: memref<1x384xf32, #tpu.memory_space<vmem>>, %arg4: memref<128x128xbf16, #tpu.memory_space<vmem>>, %arg5: memref<128x128xbf16, #tpu.memory_space<vmem>>, %arg6: memref<128x128xbf16, #tpu.memory_space<vmem>>) attributes {dimension_semantics = [#tpu.dimension_semantics<parallel>], iteration_bounds = array<i64: 2>, scalar_prefetch = 0 : i64, scratch_operands = 0 : i64, tpu.core_type = #tpu.core_type<tc>, window_params = [{transform_indices = @transform_0, window_bounds = array<i64: 128, 128>}, {pipeline_mode = #tpu.pipeline_mode<synchronous>, transform_indices = @transform_1, window_bounds = array<i64: 128, 384>}, {pipeline_mode = #tpu.pipeline_mode<synchronous>, transform_indices = @transform_2, window_bounds = array<i64: 1, 384>}, {transform_indices = @transform_3, window_bounds = array<i64: 128, 128>}, {transform_indices = @transform_4, window_bounds = array<i64: 128, 128>}, {transform_indices = @transform_5, window_bounds = array<i64: 128, 128>}]} {
    %c0 = arith.constant 0 : index
    %c0_0 = arith.constant 0 : index
    %0 = vector.load %arg1[%c0, %c0_0] : memref<128x128xbf16, #tpu.memory_space<vmem>>, vector<128x128xbf16>
    %c0_1 = arith.constant 0 : index
    %c0_2 = arith.constant 0 : index
    %1 = vector.load %arg2[%c0_1, %c0_2] : memref<128x384xbf16, #tpu.memory_space<vmem>>, vector<128x384xbf16>
    %cst = arith.constant dense<0.000000e+00> : vector<128x384xf32>
    %2 = tpu.matmul %0, %1, %cst {dimension_numbers = #tpu.dot_dimension_numbers<[1], [0], [0], [1], [0, 0, 1, 1], [], []>} : vector<128x128xbf16>, vector<128x384xbf16>, vector<128x384xf32> -> vector<128x384xf32>
    %c0_3 = arith.constant 0 : index
    %c0_4 = arith.constant 0 : index
    %3 = vector.load %arg3[%c0_3, %c0_4] : memref<1x384xf32, #tpu.memory_space<vmem>>, vector<1x384xf32>
    %4 = vector.broadcast %3 : vector<1x384xf32> to vector<128x384xf32>
    %5 = arith.addf %2, %4 : vector<128x384xf32>
    %6 = vector.extract_strided_slice %5 {offsets = [0, 0], sizes = [128, 128], strides = [1, 1]} : vector<128x384xf32> to vector<128x128xf32>
    %cst_5 = arith.constant 0.176776692 : f32
    %7 = vector.broadcast %cst_5 : f32 to vector<128x128xf32>
    %8 = arith.mulf %6, %7 : vector<128x128xf32>
    %9 = arith.truncf %8 : vector<128x128xf32> to vector<128x128xbf16>
    %c0_6 = arith.constant 0 : index
    %c0_7 = arith.constant 0 : index
    %10 = vector.load %arg4[%c0_6, %c0_7] : memref<128x128xbf16, #tpu.memory_space<vmem>>, vector<128x128xbf16>
    tpu.vector_store %arg4[%c0_6, %c0_7], %9 {strides = array<i32>} : memref<128x128xbf16, #tpu.memory_space<vmem>>, vector<128x128xbf16>,
    %11 = vector.extract_strided_slice %5 {offsets = [0, 128], sizes = [128, 128], strides = [1, 1]} : vector<128x384xf32> to vector<128x128xf32>
    %12 = arith.truncf %11 : vector<128x128xf32> to vector<128x128xbf16>
    %c0_8 = arith.constant 0 : index
    %c0_9 = arith.constant 0 : index
    %13 = vector.load %arg5[%c0_8, %c0_9] : memref<128x128xbf16, #tpu.memory_space<vmem>>, vector<128x128xbf16>
    tpu.vector_store %arg5[%c0_8, %c0_9], %12 {strides = array<i32>} : memref<128x128xbf16, #tpu.memory_space<vmem>>, vector<128x128xbf16>,
    %14 = vector.extract_strided_slice %5 {offsets = [0, 256], sizes = [128, 128], strides = [1, 1]} : vector<128x384xf32> to vector<128x128xf32>
    %15 = arith.truncf %14 : vector<128x128xf32> to vector<128x128xbf16>
    %c0_10 = arith.constant 0 : index
    %c0_11 = arith.constant 0 : index
    %16 = vector.load %arg6[%c0_10, %c0_11] : memref<128x128xbf16, #tpu.memory_space<vmem>>, vector<128x128xbf16>
    tpu.vector_store %arg6[%c0_10, %c0_11], %15 {strides = array<i32>} : memref<128x128xbf16, #tpu.memory_space<vmem>>, vector<128x128xbf16>,
    return
  }
  func.func @transform_0(%arg0: i32) -> (i32, i32) {
    %c0_i32 = arith.constant 0 : i32
    %c0_i32_0 = arith.constant 0 : i32
    return %arg0, %c0_i32 : i32, i32
  }
  func.func @transform_1(%arg0: i32) -> (i32, i32) {
    %c0_i32 = arith.constant 0 : i32
    %c0_i32_0 = arith.constant 0 : i32
    %c0_i32_1 = arith.constant 0 : i32
    return %c0_i32, %c0_i32_0 : i32, i32
  }
  func.func @transform_2(%arg0: i32) -> (i32, i32) {
    %c0_i32 = arith.constant 0 : i32
    %c0_i32_0 = arith.constant 0 : i32
    %c0_i32_1 = arith.constant 0 : i32
    return %c0_i32, %c0_i32_0 : i32, i32
  }
  func.func @transform_3(%arg0: i32) -> (i32, i32) {
    %c0_i32 = arith.constant 0 : i32
    %c0_i32_0 = arith.constant 0 : i32
    return %arg0, %c0_i32 : i32, i32
  }
  func.func @transform_4(%arg0: i32) -> (i32, i32) {
    %c0_i32 = arith.constant 0 : i32
    %c0_i32_0 = arith.constant 0 : i32
    return %arg0, %c0_i32 : i32, i32
  }
  func.func @transform_5(%arg0: i32) -> (i32, i32) {
    %c0_i32 = arith.constant 0 : i32
    %c0_i32_0 = arith.constant 0 : i32
    return %arg0, %c0_i32 : i32, i32
  }
}

</mosaic_0001>

<llo_original>
// kernel: tpu_custom_call.1
$region0: #{tpu_custom_call.1}
  #allocation0 [shape = 'u32[]', space=smem, size = 0x4, offset = 0x4, fixed_abs, tag = 'smem constant byte address 0x4 - core index']
  #allocation1 [shape = 'u32[144,128]{1,0:T(1,128)}', space=vmem, size = 0x12000, scoped, tag = 'internal scratch']
  %s0 = inlined_call_operand.hbm [shape: bf16[256,128], index: 0, kind: input, shape index: {}]
  %s1 = inlined_call_operand.hbm [shape: bf16[128,384], index: 1, kind: input, shape index: {}]
  %s2 = inlined_call_operand.vmem [shape: f32[1,384], index: 2, kind: input, shape index: {}]
  %s3 = inlined_call_operand.hbm [shape: bf16[256,128], index: 3, kind: output, shape index: {0}]
  %s4 = inlined_call_operand.hbm [shape: bf16[256,128], index: 4, kind: output, shape index: {1}]
  %s5 = inlined_call_operand.hbm [shape: bf16[256,128], index: 5, kind: output, shape index: {2}]
  %6 = xla_tuple %s3, %s4, %s5
  %s7 = sld [smem:[#allocation0]]
  $region69: #{tpu_custom_call.1} parent=0
    _
  %s9 = ssub.s32 1, %s7
  %s10 = scalar_select 0, %s9, %s7
  $region1: #{tpu_custom_call.1} parent=0
    #allocation2 [shape = 'u8[65536]{0}', space=vmem, size = 0x10000, scoped, tag = 'input window, operand 0']
    #allocation3 [shape = 's32[2]{0}', space=sflag, size = 0x8, scoped, tag = 'scoped memory for tpu_custom_call.1']
    #allocation4 [shape = 's32[2]{0}', space=sflag, size = 0x8, scoped, tag = 'scoped memory for tpu_custom_call.1']
    #allocation5 [shape = 'u8[98304]{0}', space=vmem, size = 0x18000, scoped, tag = 'input window, operand 1, single buffered']
    #allocation6 [shape = 's32[1]{0}', space=sflag, size = 0x4, scoped, tag = 'scoped memory for tpu_custom_call.1']
    #allocation7 [shape = 'u8[65536]{0}', space=vmem, size = 0x10000, scoped, tag = 'output window, operand 0']
    #allocation8 [shape = 'u8[65536]{0}', space=vmem, size = 0x10000, scoped, tag = 'output window, operand 1']
    #allocation9 [shape = 's32[2]{0}', space=sflag, size = 0x8, scoped, tag = 'scoped memory for tpu_custom_call.1']
    #allocation10 [shape = 'u8[65536]{0}', space=vmem, size = 0x10000, scoped, tag = 'output window, operand 2']
    %11 = vsyncpa [#allocation3], 0
    %s12 = scalar_lea.sflag [#allocation3], 1
    %13 = vsyncpa %s12, 0
    %14 = vsyncpa [#allocation6], 0
    %15 = vsyncpa [#allocation4], 0
    %s16 = scalar_lea.sflag [#allocation4], 1
    %17 = vsyncpa %s16, 0
    %18 = vsyncpa [#allocation9], 0
    %s19 = scalar_lea.sflag [#allocation9], 1
    %20 = vsyncpa %s19, 0
    loop: start=0, step=1, limit=4
    $region2: #{tpu_custom_call.1} parent=1 // loop_pre_header
      _
    $region3: #{tpu_custom_call.1} parent=1 // loop_header
      %s22 = sphi 0, %s26
      %p23 = scmp.ge.s32.totalorder %s22, 4
      %s32 = sphi 0, %s34
      %s35 = sphi 0, %s32
      %s36 = sphi 0, %s35
      %s52 = sphi 0, %s36
      %s56 = sphi 0, %s56
      %s58 = sphi 0, %s56
      %s59 = sphi 0, %s58
      %s73 = sphi 0, %s59
      %s77 = sphi 0, %s77
      %s79 = sphi 0, %s77
      %s80 = sphi 0, %s79
      %s94 = sphi 0, %s80
      %s100 = sphi 0, %s102
      %s103 = sphi 0, %s100
      %s104 = sphi 0, %s103
      %s120 = sphi 0, %s104
      %s126 = sphi 0, %s128
      %s129 = sphi 0, %s126
      %s130 = sphi 0, %s129
      %s146 = sphi 0, %s130
      %s152 = sphi 0, %s154
      %s155 = sphi 0, %s152
      %s156 = sphi 0, %s155
      %s172 = sphi 0, %s156
    $region4: #{tpu_custom_call.1} parent=1 // loop_header_branch
      %25 = sbr.rel (%p23) target = $region8
    $region5: #{tpu_custom_call.1} parent=1 // loop_body
      %s27 = ssub.s32 %s22, 1
      %s28 = ssub.s32 %s22, 2
      %s29 = sadd.s32 %s22, 1
      %s30 = ssub.s32 %s22, %s29
      %p31 = scmp.eq.s32.totalorder %s30, 0
      %s33 = sadd.s32 %s32, 1
      %s34 = scalar_select %p31, %s32, %s33
      %p37 = pneg %p31
      %p38 = scmp.eq.s32.totalorder %s22, 1
      %p39 = por %p37, %p38
      %p40 = scmp.ne.s32.totalorder %s32, %s35
      %p41 = scmp.eq.s32.totalorder %s22, 0
      %p42 = por %p40, %p41
      %p43 = scmp.ne.s32.totalorder %s32, %s35
      %p44 = scmp.eq.s32.totalorder %s27, 1
      %p45 = por %p43, %p44
      %p46 = scmp.ne.s32.totalorder %s35, %s36
      %p47 = scmp.eq.s32.totalorder %s27, 0
      %p48 = por %p46, %p47
      %p49 = scmp.ne.s32.totalorder %s35, %s36
      %p50 = scmp.eq.s32.totalorder %s28, 1
      %p51 = por %p49, %p50
      %p53 = scmp.ne.s32.totalorder %s36, %s52
      %p54 = scmp.eq.s32.totalorder %s28, 0
      %p55 = por %p53, %p54
      %s57 = sadd.s32 %s56, 1
      %p60 = scmp.eq.s32.totalorder %s22, 1
      %p61 = scmp.ne.s32.totalorder %s56, %s58
      %p62 = scmp.eq.s32.totalorder %s22, 0
      %p63 = por %p61, %p62
      %p64 = scmp.ne.s32.totalorder %s56, %s58
      %p65 = scmp.eq.s32.totalorder %s27, 1
      %p66 = por %p64, %p65
      %p67 = scmp.ne.s32.totalorder %s58, %s59
      %p68 = scmp.eq.s32.totalorder %s27, 0
      %p69 = por %p67, %p68
      %p70 = scmp.ne.s32.totalorder %s58, %s59
      %p71 = scmp.eq.s32.totalorder %s28, 1
      %p72 = por %p70, %p71
      %p74 = scmp.ne.s32.totalorder %s59, %s73
      %p75 = scmp.eq.s32.totalorder %s28, 0
      %p76 = por %p74, %p75
      %s78 = sadd.s32 %s77, 1
      %p81 = scmp.eq.s32.totalorder %s22, 1
      %p82 = scmp.ne.s32.totalorder %s77, %s79
      %p83 = scmp.eq.s32.totalorder %s22, 0
      %p84 = por %p82, %p83
      %p85 = scmp.ne.s32.totalorder %s77, %s79
      %p86 = scmp.eq.s32.totalorder %s27, 1
      %p87 = por %p85, %p86
      %p88 = scmp.ne.s32.totalorder %s79, %s80
      %p89 = scmp.eq.s32.totalorder %s27, 0
      %p90 = por %p88, %p89
      %p91 = scmp.ne.s32.totalorder %s79, %s80
      %p92 = scmp.eq.s32.totalorder %s28, 1
      %p93 = por %p91, %p92
      %p95 = scmp.ne.s32.totalorder %s80, %s94
      %p96 = scmp.eq.s32.totalorder %s28, 0
      %p97 = por %p95, %p96
      %s98 = ssub.s32 %s22, %s29
      %p99 = scmp.eq.s32.totalorder %s98, 0
      %s101 = sadd.s32 %s100, 1
      %s102 = scalar_select %p99, %s100, %s101
      %p105 = pneg %p99
      %p106 = scmp.eq.s32.totalorder %s22, 1
      %p107 = por %p105, %p106
      %p108 = scmp.ne.s32.totalorder %s100, %s103
      %p109 = scmp.eq.s32.totalorder %s22, 0
      %p110 = por %p108, %p109
      %p111 = scmp.ne.s32.totalorder %s100, %s103
      %p112 = scmp.eq.s32.totalorder %s27, 1
      %p113 = por %p111, %p112
      %p114 = scmp.ne.s32.totalorder %s103, %s104
      %p115 = scmp.eq.s32.totalorder %s27, 0
      %p116 = por %p114, %p115
      %p117 = scmp.ne.s32.totalorder %s103, %s104
      %p118 = scmp.eq.s32.totalorder %s28, 1
      %p119 = por %p117, %p118
      %p121 = scmp.ne.s32.totalorder %s104, %s120
      %p122 = scmp.eq.s32.totalorder %s28, 0
      %p123 = por %p121, %p122
      %s124 = ssub.s32 %s22, %s29
      %p125 = scmp.eq.s32.totalorder %s124, 0
      %s127 = sadd.s32 %s126, 1
      %s128 = scalar_select %p125, %s126, %s127
      %p131 = pneg %p125
      %p132 = scmp.eq.s32.totalorder %s22, 1
      %p133 = por %p131, %p132
      %p134 = scmp.ne.s32.totalorder %s126, %s129
      %p135 = scmp.eq.s32.totalorder %s22, 0
      %p136 = por %p134, %p135
      %p137 = scmp.ne.s32.totalorder %s126, %s129
      %p138 = scmp.eq.s32.totalorder %s27, 1
      %p139 = por %p137, %p138
      %p140 = scmp.ne.s32.totalorder %s129, %s130
      %p141 = scmp.eq.s32.totalorder %s27, 0
      %p142 = por %p140, %p141
      %p143 = scmp.ne.s32.totalorder %s129, %s130
      %p144 = scmp.eq.s32.totalorder %s28, 1
      %p145 = por %p143, %p144
      %p147 = scmp.ne.s32.totalorder %s130, %s146
      %p148 = scmp.eq.s32.totalorder %s28, 0
      %p149 = por %p147, %p148
      %s150 = ssub.s32 %s22, %s29
      %p151 = scmp.eq.s32.totalorder %s150, 0
      %s153 = sadd.s32 %s152, 1
      %s154 = scalar_select %p151, %s152, %s153
      %p157 = pneg %p151
      %p158 = scmp.eq.s32.totalorder %s22, 1
      %p159 = por %p157, %p158
      %p160 = scmp.ne.s32.totalorder %s152, %s155
      %p161 = scmp.eq.s32.totalorder %s22, 0
      %p162 = por %p160, %p161
      %p163 = scmp.ne.s32.totalorder %s152, %s155
      %p164 = scmp.eq.s32.totalorder %s27, 1
      %p165 = por %p163, %p164
      %p166 = scmp.ne.s32.totalorder %s155, %s156
      %p167 = scmp.eq.s32.totalorder %s27, 0
      %p168 = por %p166, %p167
      %p169 = scmp.ne.s32.totalorder %s155, %s156
      %p170 = scmp.eq.s32.totalorder %s28, 1
      %p171 = por %p169, %p170
      %p173 = scmp.ne.s32.totalorder %s156, %s172
      %p174 = scmp.eq.s32.totalorder %s28, 0
      %p175 = por %p173, %p174
      %p176 = scmp.le.s32.totalorder 1, %s22
      %p177 = scmp.lt.s32.totalorder %s22, 3
      %p178 = pnand %p176, %p177
      %p179 = pneg %p178
      // Predicated region
      $region9: #{tpu_custom_call.1} parent=5 // pred_check
        _
      $region10: #{tpu_custom_call.1} parent=5 // pred_check_branch
        %181 = sbr.rel (%p178) target = $region12
      $region11: #{tpu_custom_call.1} parent=5 // pred_region
        %s182 = ssub.s32 %s22, 1
        // Predicated region
        $region13: #{tpu_custom_call.1} parent=11 // pred_check
          %p183 = pneg %p69
        $region14: #{tpu_custom_call.1} parent=11 // pred_check_branch
          %185 = sbr.rel (%p183) target = $region16
        $region15: #{tpu_custom_call.1} parent=11 // pred_region
          %s187 = ssub.s32 3072, 3072
          %188 = vsyncadd [#allocation6], %s187
          %s189 = sshll.u32 [#allocation5], 4
          %s190 = int_to_ptr.vmem [resolvable:$true] %s189
          %195 = dma.hbm_to_vmem [thread:$0]  %s1, 3072, %s190, [#allocation6], 192, 192, 12
        $region16: #{tpu_custom_call.1} parent=11 // pred_fallthru
          _
        // Predicated region
        $region17: #{tpu_custom_call.1} parent=11 // pred_check
          %p196 = pneg %p90
        $region18: #{tpu_custom_call.1} parent=11 // pred_check_branch
          %198 = sbr.rel (%p196) target = $region20
        $region19: #{tpu_custom_call.1} parent=11 // pred_region
          _
        $region20: #{tpu_custom_call.1} parent=11 // pred_fallthru
          _
      $region12: #{tpu_custom_call.1} parent=5 // pred_fallthru
        _
      %p199 = scmp.lt.s32.totalorder %s22, 2
      // Predicated region
      $region21: #{tpu_custom_call.1} parent=5 // pred_check
        %p200 = pneg %p199
      $region22: #{tpu_custom_call.1} parent=5 // pred_check_branch
        %202 = sbr.rel (%p200) target = $region24
      $region23: #{tpu_custom_call.1} parent=5 // pred_region
        // Predicated region
        $region25: #{tpu_custom_call.1} parent=23 // pred_check
          %p203 = pneg %p42
        $region26: #{tpu_custom_call.1} parent=23 // pred_check_branch
          %205 = sbr.rel (%p203) target = $region28
        $region27: #{tpu_custom_call.1} parent=23 // pred_region
          %s206 = sand.u32 %s32, 1
          %s207 = scalar_lea.sflag [#allocation3], %s206
          %s208 = sand.u32 %s32, 1
          %s209 = smul.addr %s208, 64
          %s210 = scalar_lea.vmem [#allocation2], %s209
          %s211 = smul.u32 16, %s22
          %s213 = ssub.s32 1024, 1024
          %214 = vsyncadd %s207, %s213
          %s215 = smul.addr %s211, 64
          %s216 = scalar_lea.hbm %s0, %s215
          %s217 = sshll.u32 %s210, 4
          %s218 = int_to_ptr.vmem [resolvable:$true] %s217
          %223 = dma.hbm_to_vmem [thread:$0]  %s216, 1024, %s218, %s207, 64, 64, 4
        $region28: #{tpu_custom_call.1} parent=23 // pred_fallthru
          _
      $region24: #{tpu_custom_call.1} parent=5 // pred_fallthru
        _
      %p224 = scmp.le.s32.totalorder 1, %s22
      %p225 = scmp.lt.s32.totalorder %s22, 3
      %p226 = pnand %p224, %p225
      %p227 = pneg %p226
      // Predicated region
      $region29: #{tpu_custom_call.1} parent=5 // pred_check
        _
      $region30: #{tpu_custom_call.1} parent=5 // pred_check_branch
        %229 = sbr.rel (%p226) target = $region32
      $region31: #{tpu_custom_call.1} parent=5 // pred_region
        %s230 = ssub.s32 %s22, 1
        %s231 = sand.u32 %s35, 1
        %s232 = scalar_lea.sflag [#allocation3], %s231
        %s233 = sand.u32 %s35, 1
        %s234 = smul.addr %s233, 64
        %s235 = scalar_lea.vmem [#allocation2], %s234
        // Predicated region
        $region33: #{tpu_custom_call.1} parent=31 // pred_check
          %p236 = pneg %p48
        $region34: #{tpu_custom_call.1} parent=31 // pred_check_branch
          %238 = sbr.rel (%p236) target = $region36
        $region35: #{tpu_custom_call.1} parent=31 // pred_region
          %239 = dma.done %s232, 1024
        $region36: #{tpu_custom_call.1} parent=31 // pred_fallthru
          _
        // Predicated region
        $region37: #{tpu_custom_call.1} parent=31 // pred_check
          %p240 = pneg %p69
        $region38: #{tpu_custom_call.1} parent=31 // pred_check_branch
          %242 = sbr.rel (%p240) target = $region40
        $region39: #{tpu_custom_call.1} parent=31 // pred_region
          %243 = dma.done [#allocation6], 3072
        $region40: #{tpu_custom_call.1} parent=31 // pred_fallthru
          _
        %s244 = sand.u32 %s35, 1
        %s245 = scalar_lea.sflag [#allocation3], %s244
        %s246 = sand.u32 %s35, 1
        %s247 = smul.addr %s246, 64
        %s248 = scalar_lea.vmem [#allocation2], %s247
        %p249 = pneg %p48
        %p250 = pneg %p45
        %p251 = pneg %p69
        %p252 = pneg %p66
        %p253 = pneg %p90
        %p254 = pneg %p87
        %p255 = pneg %p116
        %p256 = pneg %p113
        %s257 = sand.u32 %s103, 1
        %s258 = scalar_lea.sflag [#allocation4], %s257
        %s259 = sand.u32 %s103, 1
        %s260 = smul.addr %s259, 64
        %s261 = scalar_lea.vmem [#allocation7], %s260
        %p262 = pneg %p142
        %p263 = pneg %p139
        %s264 = sand.u32 %s27, 1
        %s265 = scalar_lea.sflag [#allocation9], %s264
        %s266 = sand.u32 %s129, 1
        %s267 = smul.addr %s266, 64
        %s268 = scalar_lea.vmem [#allocation8], %s267
        %p269 = pneg %p168
        %p270 = pneg %p165
        %s271 = sand.u32 %s27, 1
        %s272 = scalar_lea.sflag [#allocation9], %s271
        %s273 = sand.u32 %s155, 1
        %s274 = smul.addr %s273, 64
        %s275 = scalar_lea.vmem [#allocation10], %s274
        %s276 = smul.u32 16, %s27
        %s277 = smul.u32 16, %s27
        %s278 = smul.u32 16, %s27
        %s279 = smul.u32 16, %s27
        %v281 = vld [vmem:[%s235] sm:$0xf]
        %v282 = vld [vmem:[%s235 + $0x4] sm:$0xf]
        %v283 = vld [vmem:[%s235 + $0x8] sm:$0xf]
        %v284 = vld [vmem:[%s235 + $0xc] sm:$0xf]
        %v285 = vld [vmem:[%s235 + $0x10] sm:$0xf]
        %v286 = vld [vmem:[%s235 + $0x14] sm:$0xf]
        %v287 = vld [vmem:[%s235 + $0x18] sm:$0xf]
        %v288 = vld [vmem:[%s235 + $0x1c] sm:$0xf]
        %v289 = vld [vmem:[%s235 + $0x20] sm:$0xf]
        %v290 = vld [vmem:[%s235 + $0x24] sm:$0xf]
        %v291 = vld [vmem:[%s235 + $0x28] sm:$0xf]
        %v292 = vld [vmem:[%s235 + $0x2c] sm:$0xf]
        %v293 = vld [vmem:[%s235 + $0x30] sm:$0xf]
        %v294 = vld [vmem:[%s235 + $0x34] sm:$0xf]
        %v295 = vld [vmem:[%s235 + $0x38] sm:$0xf]
        %v296 = vld [vmem:[%s235 + $0x3c] sm:$0xf]
        %v297 = vld [vmem:[#allocation5] sm:$0xff]
        %v298 = vld [vmem:[#allocation5 + $0x8] sm:$0xf]
        %v299 = vld [vmem:[#allocation5 + $0xc] sm:$0xff]
        %v300 = vld [vmem:[#allocation5 + $0x14] sm:$0xf]
        %v301 = vld [vmem:[#allocation5 + $0x18] sm:$0xff]
        %v302 = vld [vmem:[#allocation5 + $0x20] sm:$0xf]
        %v303 = vld [vmem:[#allocation5 + $0x24] sm:$0xff]
        %v304 = vld [vmem:[#allocation5 + $0x2c] sm:$0xf]
        %v305 = vld [vmem:[#allocation5 + $0x30] sm:$0xff]
        %v306 = vld [vmem:[#allocation5 + $0x38] sm:$0xf]
        %v307 = vld [vmem:[#allocation5 + $0x3c] sm:$0xff]
        %v308 = vld [vmem:[#allocation5 + $0x44] sm:$0xf]
        %v309 = vld [vmem:[#allocation5 + $0x48] sm:$0xff]
        %v310 = vld [vmem:[#allocation5 + $0x50] sm:$0xf]
        %v311 = vld [vmem:[#allocation5 + $0x54] sm:$0xff]
        %v312 = vld [vmem:[#allocation5 + $0x5c] sm:$0xf]
        %v313 = vld [vmem:[#allocation5 + $0x60] sm:$0xff]
        %v314 = vld [vmem:[#allocation5 + $0x68] sm:$0xf]
        %v315 = vld [vmem:[#allocation5 + $0x6c] sm:$0xff]
        %v316 = vld [vmem:[#allocation5 + $0x74] sm:$0xf]
        %v317 = vld [vmem:[#allocation5 + $0x78] sm:$0xff]
        %v318 = vld [vmem:[#allocation5 + $0x80] sm:$0xf]
        %v319 = vld [vmem:[#allocation5 + $0x84] sm:$0xff]
        %v320 = vld [vmem:[#allocation5 + $0x8c] sm:$0xf]
        %v321 = vld [vmem:[#allocation5 + $0x90] sm:$0xff]
        %v322 = vld [vmem:[#allocation5 + $0x98] sm:$0xf]
        %v323 = vld [vmem:[#allocation5 + $0x9c] sm:$0xff]
        %v324 = vld [vmem:[#allocation5 + $0xa4] sm:$0xf]
        %v325 = vld [vmem:[#allocation5 + $0xa8] sm:$0xff]
        %v326 = vld [vmem:[#allocation5 + $0xb0] sm:$0xf]
        %v327 = vld [vmem:[#allocation5 + $0xb4] sm:$0xff]
        %v328 = vld [vmem:[#allocation5 + $0xbc] sm:$0xf]
        %v329 = vld [vmem:[%s2] sm:$0x7]
        %v331 = vlaneseq
        %v332 = vshrl.u32 %v331, 7
        %v333 = vsub.s32 0, %v332
        %v334 = vrot.slane %v329, %v333
        %v335 = vlaneseq
        %v336 = vshrl.u32 %v335, 7
        %v337 = vsub.s32 1, %v336
        %v338 = vrot.slane %v329, %v337
        %v339 = vlaneseq
        %v340 = vshrl.u32 %v339, 7
        %v341 = vsub.s32 2, %v340
        %v342 = vrot.slane %v329, %v341
        %v362 = vunpack.c.l.b16 %v281
        %v363 = vunpack.c.l.b16 %v282
        %v364 = vunpack.c.l.b16 %v283
        %v365 = vunpack.c.l.b16 %v284
        %v366 = vunpack.c.l.b16 %v285
        %v367 = vunpack.c.l.b16 %v286
        %v368 = vunpack.c.l.b16 %v287
        %v369 = vunpack.c.l.b16 %v288
        %v370 = vunpack.c.l.b16 %v289
        %v371 = vunpack.c.l.b16 %v290
        %v372 = vunpack.c.l.b16 %v291
        %v373 = vunpack.c.l.b16 %v292
        %v374 = vunpack.c.l.b16 %v293
        %v375 = vunpack.c.l.b16 %v294
        %v376 = vunpack.c.l.b16 %v295
        %v377 = vunpack.c.l.b16 %v296
        %v378 = vpack.c.b16 %v363, %v362
        %v379 = vpack.c.b16 %v365, %v364
        %v380 = vpack.c.b16 %v367, %v366
        %v381 = vpack.c.b16 %v369, %v368
        %v382 = vpack.c.b16 %v371, %v370
        %v383 = vpack.c.b16 %v373, %v372
        %v384 = vpack.c.b16 %v375, %v374
        %v385 = vpack.c.b16 %v377, %v376
        %v426 = vunpack.c.l.b16 %v297
        %v427 = vunpack.c.h.b16 %v297
        %v428 = vunpack.c.l.b16 %v298
        %v429 = vunpack.c.l.b16 %v299
        %v430 = vunpack.c.h.b16 %v299
        %v431 = vunpack.c.l.b16 %v300
        %v432 = vunpack.c.l.b16 %v301
        %v433 = vunpack.c.h.b16 %v301
        %v434 = vunpack.c.l.b16 %v302
        %v435 = vunpack.c.l.b16 %v303
        %v436 = vunpack.c.h.b16 %v303
        %v437 = vunpack.c.l.b16 %v304
        %v438 = vunpack.c.l.b16 %v305
        %v439 = vunpack.c.h.b16 %v305
        %v440 = vunpack.c.l.b16 %v306
        %v441 = vunpack.c.l.b16 %v307
        %v442 = vunpack.c.h.b16 %v307
        %v443 = vunpack.c.l.b16 %v308
        %v444 = vunpack.c.l.b16 %v309
        %v445 = vunpack.c.h.b16 %v309
        %v446 = vunpack.c.l.b16 %v310
        %v447 = vunpack.c.l.b16 %v311
        %v448 = vunpack.c.h.b16 %v311
        %v449 = vunpack.c.l.b16 %v312
        %v450 = vunpack.c.l.b16 %v313
        %v451 = vunpack.c.h.b16 %v313
        %v452 = vunpack.c.l.b16 %v314
        %v453 = vunpack.c.l.b16 %v315
        %v454 = vunpack.c.h.b16 %v315
        %v455 = vunpack.c.l.b16 %v316
        %v456 = vunpack.c.l.b16 %v317
        %v457 = vunpack.c.h.b16 %v317
        %v458 = vunpack.c.l.b16 %v318
        %v459 = vunpack.c.l.b16 %v319
        %v460 = vunpack.c.h.b16 %v319
        %v461 = vunpack.c.l.b16 %v320
        %v462 = vunpack.c.l.b16 %v321
        %v463 = vunpack.c.h.b16 %v321
        %v464 = vunpack.c.l.b16 %v322
        %v465 = vunpack.c.l.b16 %v323
        %v466 = vunpack.c.h.b16 %v323
        %v467 = vunpack.c.l.b16 %v324
        %v468 = vunpack.c.l.b16 %v325
        %v469 = vunpack.c.h.b16 %v325
        %v470 = vunpack.c.l.b16 %v326
        %v471 = vunpack.c.l.b16 %v327
        %v472 = vunpack.c.h.b16 %v327
        %v473 = vunpack.c.l.b16 %v328
        %v474 = vpack.c.b16 %v429, %v426
        %v475 = vpack.c.b16 %v430, %v427
        %v476 = vpack.c.b16 %v431, %v428
        %v477 = vpack.c.b16 %v435, %v432
        %v478 = vpack.c.b16 %v436, %v433
        %v479 = vpack.c.b16 %v437, %v434
        %v480 = vpack.c.b16 %v441, %v438
        %v481 = vpack.c.b16 %v442, %v439
        %v482 = vpack.c.b16 %v443, %v440
        %v483 = vpack.c.b16 %v447, %v444
        %v484 = vpack.c.b16 %v448, %v445
        %v485 = vpack.c.b16 %v449, %v446
        %v486 = vpack.c.b16 %v453, %v450
        %v487 = vpack.c.b16 %v454, %v451
        %v488 = vpack.c.b16 %v455, %v452
        %v489 = vpack.c.b16 %v459, %v456
        %v490 = vpack.c.b16 %v460, %v457
        %v491 = vpack.c.b16 %v461, %v458
        %v492 = vpack.c.b16 %v465, %v462
        %v493 = vpack.c.b16 %v466, %v463
        %v494 = vpack.c.b16 %v467, %v464
        %v495 = vpack.c.b16 %v471, %v468
        %v496 = vpack.c.b16 %v472, %v469
        %v497 = vpack.c.b16 %v473, %v470
        %522 = vmatprep.subr.bf16.mxu0 %v496
        %523 = vmatpush1.bf16.msra.mxu0 %v495
        %524 = vmatprep.subr.bf16.mxu0 %v493
        %525 = vmatpush1.bf16.msra.mxu0 %v492
        %526 = vmatprep.subr.bf16.mxu0 %v490
        %527 = vmatpush1.bf16.msra.mxu0 %v489
        %528 = vmatprep.subr.bf16.mxu0 %v487
        %529 = vmatpush1.bf16.msra.mxu0 %v486
        %530 = vmatprep.subr.bf16.mxu0 %v484
        %531 = vmatpush1.bf16.msra.mxu0 %v483
        %532 = vmatprep.subr.bf16.mxu0 %v481
        %533 = vmatpush1.bf16.msra.mxu0 %v480
        %534 = vmatprep.subr.bf16.mxu0 %v478
        %535 = vmatpush1.bf16.msra.mxu0 %v477
        %536 = vmatprep.subr.bf16.mxu0 %v475
        %537 = vmatpush1.bf16.msra.mxu0 %v474
        %538 = vmatprep.subr.bf16.mxu0 0
        %539 = vmatpush2.bf16.msra.mxu0 0
        %540 = vmatprep.subr.bf16.mxu0 0
        %541 = vmatpush2.bf16.msra.mxu0 0
        %542 = vmatprep.subr.bf16.mxu0 0
        %543 = vmatpush2.bf16.msra.mxu0 0
        %544 = vmatprep.subr.bf16.mxu0 0
        %545 = vmatpush2.bf16.msra.mxu0 0
        %546 = vmatprep.subr.bf16.mxu0 0
        %547 = vmatpush2.bf16.msra.mxu0 0
        %548 = vmatprep.subr.bf16.mxu0 0
        %549 = vmatpush2.bf16.msra.mxu0 0
        %550 = vmatprep.subr.bf16.mxu0 0
        %551 = vmatpush2.bf16.msra.mxu0 0
        %552 = vmatprep.subr.bf16.mxu0 0
        %553 = vmatpush2.bf16.msra.mxu0 0
        %554 = vmatprep.mubr.bf16.mxu0 0
        %555 = vmatmul.mubr.bf16.gmra.mxu0 %v378
        %v556 = vpop.f32.mrf.mxu0
        %v557 = vadd.f32 %v334, %v556
        %v558 = vpop.f32.mrf.mxu0
        %v559 = vadd.f32 %v338, %v558
        %v560 = vpop.f32.mrf.mxu0
        %v561 = vadd.f32 %v334, %v560
        %v562 = vpop.f32.mrf.mxu0
        %v563 = vadd.f32 %v338, %v562
        %564 = vmatprep.mubr.bf16.mxu0 0
        %565 = vmatmul.mubr.bf16.gmra.mxu0 %v379
        %v566 = vpop.f32.mrf.mxu0
        %v567 = vadd.f32 %v334, %v566
        %v568 = vpop.f32.mrf.mxu0
        %v569 = vadd.f32 %v338, %v568
        %v570 = vpop.f32.mrf.mxu0
        %v571 = vadd.f32 %v334, %v570
        %v572 = vpop.f32.mrf.mxu0
        %v573 = vadd.f32 %v338, %v572
        %574 = vmatprep.mubr.bf16.mxu0 0
        %575 = vmatmul.mubr.bf16.gmra.mxu0 %v380
        %v576 = vpop.f32.mrf.mxu0
        %v577 = vadd.f32 %v334, %v576
        %v578 = vpop.f32.mrf.mxu0
        %v579 = vadd.f32 %v338, %v578
        %v580 = vpop.f32.mrf.mxu0
        %v581 = vadd.f32 %v334, %v580
        %v582 = vpop.f32.mrf.mxu0
        %v583 = vadd.f32 %v338, %v582
        %584 = vmatprep.mubr.bf16.mxu0 0
        %585 = vmatmul.mubr.bf16.gmra.mxu0 %v381
        %v586 = vpop.f32.mrf.mxu0
        %v587 = vadd.f32 %v334, %v586
        %v588 = vpop.f32.mrf.mxu0
        %v589 = vadd.f32 %v338, %v588
        %v590 = vpop.f32.mrf.mxu0
        %v591 = vadd.f32 %v334, %v590
        %v592 = vpop.f32.mrf.mxu0
        %v593 = vadd.f32 %v338, %v592
        %594 = vmatprep.mubr.bf16.mxu0 0
        %595 = vmatmul.mubr.bf16.gmra.mxu0 %v382
        %v596 = vpop.f32.mrf.mxu0
        %v597 = vadd.f32 %v334, %v596
        %v598 = vpop.f32.mrf.mxu0
        %v599 = vadd.f32 %v338, %v598
        %v600 = vpop.f32.mrf.mxu0
        %v601 = vadd.f32 %v334, %v600
        %v602 = vpop.f32.mrf.mxu0
        %v603 = vadd.f32 %v338, %v602
        %604 = vmatprep.mubr.bf16.mxu0 0
        %605 = vmatmul.mubr.bf16.gmra.mxu0 %v383
        %v606 = vpop.f32.mrf.mxu0
        %v607 = vadd.f32 %v334, %v606
        %v608 = vpop.f32.mrf.mxu0
        %v609 = vadd.f32 %v338, %v608
        %v610 = vpop.f32.mrf.mxu0
        %v611 = vadd.f32 %v334, %v610
        %v612 = vpop.f32.mrf.mxu0
        %v613 = vadd.f32 %v338, %v612
        %614 = vmatprep.mubr.bf16.mxu0 0
        %615 = vmatmul.mubr.bf16.gmra.mxu0 %v384
        %v616 = vpop.f32.mrf.mxu0
        %v617 = vadd.f32 %v334, %v616
        %v618 = vpop.f32.mrf.mxu0
        %v619 = vadd.f32 %v338, %v618
        %v620 = vpop.f32.mrf.mxu0
        %v621 = vadd.f32 %v334, %v620
        %v622 = vpop.f32.mrf.mxu0
        %v623 = vadd.f32 %v338, %v622
        %624 = vmatprep.mubr.bf16.mxu0 0
        %625 = vmatmul.mubr.bf16.gmra.mxu0 %v385
        %v626 = vpop.f32.mrf.mxu0
        %v627 = vadd.f32 %v334, %v626
        %v628 = vpop.f32.mrf.mxu0
        %v629 = vadd.f32 %v338, %v628
        %v630 = vpop.f32.mrf.mxu0
        %v631 = vadd.f32 %v334, %v630
        %v632 = vpop.f32.mrf.mxu0
        %v633 = vadd.f32 %v338, %v632
        %634 = vdwg.mxu0
        %635 = vmatprep.subr.bf16.mxu0 0
        %636 = vmatpush1.bf16.msra.mxu0 %v497
        %637 = vmatprep.subr.bf16.mxu0 0
        %638 = vmatpush1.bf16.msra.mxu0 %v494
        %639 = vmatprep.subr.bf16.mxu0 0
        %640 = vmatpush1.bf16.msra.mxu0 %v491
        %641 = vmatprep.subr.bf16.mxu0 0
        %642 = vmatpush1.bf16.msra.mxu0 %v488
        %643 = vmatprep.subr.bf16.mxu0 0
        %644 = vmatpush1.bf16.msra.mxu0 %v485
        %645 = vmatprep.subr.bf16.mxu0 0
        %646 = vmatpush1.bf16.msra.mxu0 %v482
        %647 = vmatprep.subr.bf16.mxu0 0
        %648 = vmatpush1.bf16.msra.mxu0 %v479
        %649 = vmatprep.subr.bf16.mxu0 0
        %650 = vmatpush1.bf16.msra.mxu0 %v476
        %651 = vmatprep.subr.bf16.mxu0 0
        %652 = vmatpush2.bf16.msra.mxu0 0
        %653 = vmatprep.subr.bf16.mxu0 0
        %654 = vmatpush2.bf16.msra.mxu0 0
        %655 = vmatprep.subr.bf16.mxu0 0
        %656 = vmatpush2.bf16.msra.mxu0 0
        %657 = vmatprep.subr.bf16.mxu0 0
        %658 = vmatpush2.bf16.msra.mxu0 0
        %659 = vmatprep.subr.bf16.mxu0 0
        %660 = vmatpush2.bf16.msra.mxu0 0
        %661 = vmatprep.subr.bf16.mxu0 0
        %662 = vmatpush2.bf16.msra.mxu0 0
        %663 = vmatprep.subr.bf16.mxu0 0
        %664 = vmatpush2.bf16.msra.mxu0 0
        %665 = vmatprep.subr.bf16.mxu0 0
        %666 = vmatpush2.bf16.msra.mxu0 0
        %667 = vmatprep.mubr.bf16.mxu0 0
        %668 = vmatmul.mubr.bf16.gmra.mxu0 %v378
        %v669 = vpop.f32.mrf.mxu0
        %v670 = vadd.f32 %v342, %v669
        %v671 = vpop.f32.mrf.mxu0
        %v672 = vpop.f32.mrf.mxu0
        %v673 = vadd.f32 %v342, %v672
        %v674 = vpop.f32.mrf.mxu0
        %675 = vmatprep.mubr.bf16.mxu0 0
        %676 = vmatmul.mubr.bf16.gmra.mxu0 %v379
        %v677 = vpop.f32.mrf.mxu0
        %v678 = vadd.f32 %v342, %v677
        %v679 = vpop.f32.mrf.mxu0
        %v680 = vpop.f32.mrf.mxu0
        %v681 = vadd.f32 %v342, %v680
        %v682 = vpop.f32.mrf.mxu0
        %683 = vmatprep.mubr.bf16.mxu0 0
        %684 = vmatmul.mubr.bf16.gmra.mxu0 %v380
        %v685 = vpop.f32.mrf.mxu0
        %v686 = vadd.f32 %v342, %v685
        %v687 = vpop.f32.mrf.mxu0
        %v688 = vpop.f32.mrf.mxu0
        %v689 = vadd.f32 %v342, %v688
        %v690 = vpop.f32.mrf.mxu0
        %691 = vmatprep.mubr.bf16.mxu0 0
        %692 = vmatmul.mubr.bf16.gmra.mxu0 %v381
        %v693 = vpop.f32.mrf.mxu0
        %v694 = vadd.f32 %v342, %v693
        %v695 = vpop.f32.mrf.mxu0
        %v696 = vpop.f32.mrf.mxu0
        %v697 = vadd.f32 %v342, %v696
        %v698 = vpop.f32.mrf.mxu0
        %699 = vmatprep.mubr.bf16.mxu0 0
        %700 = vmatmul.mubr.bf16.gmra.mxu0 %v382
        %v701 = vpop.f32.mrf.mxu0
        %v702 = vadd.f32 %v342, %v701
        %v703 = vpop.f32.mrf.mxu0
        %v704 = vpop.f32.mrf.mxu0
        %v705 = vadd.f32 %v342, %v704
        %v706 = vpop.f32.mrf.mxu0
        %707 = vmatprep.mubr.bf16.mxu0 0
        %708 = vmatmul.mubr.bf16.gmra.mxu0 %v383
        %v709 = vpop.f32.mrf.mxu0
        %v710 = vadd.f32 %v342, %v709
        %v711 = vpop.f32.mrf.mxu0
        %v712 = vpop.f32.mrf.mxu0
        %v713 = vadd.f32 %v342, %v712
        %v714 = vpop.f32.mrf.mxu0
        %715 = vmatprep.mubr.bf16.mxu0 0
        %716 = vmatmul.mubr.bf16.gmra.mxu0 %v384
        %v717 = vpop.f32.mrf.mxu0
        %v718 = vadd.f32 %v342, %v717
        %v719 = vpop.f32.mrf.mxu0
        %v720 = vpop.f32.mrf.mxu0
        %v721 = vadd.f32 %v342, %v720
        %v722 = vpop.f32.mrf.mxu0
        %723 = vmatprep.mubr.bf16.mxu0 0
        %724 = vmatmul.mubr.bf16.gmra.mxu0 %v385
        %v725 = vpop.f32.mrf.mxu0
        %v726 = vadd.f32 %v342, %v725
        %v727 = vpop.f32.mrf.mxu0
        %v728 = vpop.f32.mrf.mxu0
        %v729 = vadd.f32 %v342, %v728
        %v730 = vpop.f32.mrf.mxu0
        %731 = vdwg.mxu0
        %v732 = vmul.f32 %v557, 0.17677669
        %v733 = vmul.f32 %v561, 0.17677669
        %v734 = vmul.f32 %v567, 0.17677669
        %v735 = vmul.f32 %v571, 0.17677669
        %v736 = vmul.f32 %v577, 0.17677669
        %v737 = vmul.f32 %v581, 0.17677669
        %v738 = vmul.f32 %v587, 0.17677669
        %v739 = vmul.f32 %v591, 0.17677669
        %v740 = vmul.f32 %v597, 0.17677669
        %v741 = vmul.f32 %v601, 0.17677669
        %v742 = vmul.f32 %v607, 0.17677669
        %v743 = vmul.f32 %v611, 0.17677669
        %v744 = vmul.f32 %v617, 0.17677669
        %v745 = vmul.f32 %v621, 0.17677669
        %v746 = vmul.f32 %v627, 0.17677669
        %v747 = vmul.f32 %v631, 0.17677669
        %v748 = vpack.c.bf16 %v733, %v732
        %v749 = vpack.c.bf16 %v735, %v734
        %v750 = vpack.c.bf16 %v737, %v736
        %v751 = vpack.c.bf16 %v739, %v738
        %v752 = vpack.c.bf16 %v741, %v740
        %v753 = vpack.c.bf16 %v743, %v742
        %v754 = vpack.c.bf16 %v745, %v744
        %v755 = vpack.c.bf16 %v747, %v746
        %v764 = vunpack.c.l.b16 %v748
        %v765 = vunpack.c.h.b16 %v748
        %v766 = vunpack.c.l.b16 %v749
        %v767 = vunpack.c.h.b16 %v749
        %v768 = vunpack.c.l.b16 %v750
        %v769 = vunpack.c.h.b16 %v750
        %v770 = vunpack.c.l.b16 %v751
        %v771 = vunpack.c.h.b16 %v751
        %v772 = vunpack.c.l.b16 %v752
        %v773 = vunpack.c.h.b16 %v752
        %v774 = vunpack.c.l.b16 %v753
        %v775 = vunpack.c.h.b16 %v753
        %v776 = vunpack.c.l.b16 %v754
        %v777 = vunpack.c.h.b16 %v754
        %v778 = vunpack.c.l.b16 %v755
        %v779 = vunpack.c.h.b16 %v755
        %v780 = vpack.c.b16 %v764, %v764
        %v781 = vpack.c.b16 %v765, %v765
        %v782 = vpack.c.b16 %v766, %v766
        %v783 = vpack.c.b16 %v767, %v767
        %v784 = vpack.c.b16 %v768, %v768
        %v785 = vpack.c.b16 %v769, %v769
        %v786 = vpack.c.b16 %v770, %v770
        %v787 = vpack.c.b16 %v771, %v771
        %v788 = vpack.c.b16 %v772, %v772
        %v789 = vpack.c.b16 %v773, %v773
        %v790 = vpack.c.b16 %v774, %v774
        %v791 = vpack.c.b16 %v775, %v775
        %v792 = vpack.c.b16 %v776, %v776
        %v793 = vpack.c.b16 %v777, %v777
        %v794 = vpack.c.b16 %v778, %v778
        %v795 = vpack.c.b16 %v779, %v779
        %812 = vst [vmem:[%s261] sm:$0xf] %v780
        %813 = vst [vmem:[%s261 + $0x4] sm:$0xf] %v781
        %814 = vst [vmem:[%s261 + $0x8] sm:$0xf] %v782
        %815 = vst [vmem:[%s261 + $0xc] sm:$0xf] %v783
        %816 = vst [vmem:[%s261 + $0x10] sm:$0xf] %v784
        %817 = vst [vmem:[%s261 + $0x14] sm:$0xf] %v785
        %818 = vst [vmem:[%s261 + $0x18] sm:$0xf] %v786
        %819 = vst [vmem:[%s261 + $0x1c] sm:$0xf] %v787
        %820 = vst [vmem:[%s261 + $0x20] sm:$0xf] %v788
        %821 = vst [vmem:[%s261 + $0x24] sm:$0xf] %v789
        %822 = vst [vmem:[%s261 + $0x28] sm:$0xf] %v790
        %823 = vst [vmem:[%s261 + $0x2c] sm:$0xf] %v791
        %824 = vst [vmem:[%s261 + $0x30] sm:$0xf] %v792
        %825 = vst [vmem:[%s261 + $0x34] sm:$0xf] %v793
        %826 = vst [vmem:[%s261 + $0x38] sm:$0xf] %v794
        %827 = vst [vmem:[%s261 + $0x3c] sm:$0xf] %v795
        %v828 = vpack.c.bf16 %v563, %v559
        %v829 = vpack.c.bf16 %v573, %v569
        %v830 = vpack.c.bf16 %v583, %v579
        %v831 = vpack.c.bf16 %v593, %v589
        %v832 = vpack.c.bf16 %v603, %v599
        %v833 = vpack.c.bf16 %v613, %v609
        %v834 = vpack.c.bf16 %v623, %v619
        %v835 = vpack.c.bf16 %v633, %v629
        %v844 = vunpack.c.l.b16 %v828
        %v845 = vunpack.c.h.b16 %v828
        %v846 = vunpack.c.l.b16 %v829
        %v847 = vunpack.c.h.b16 %v829
        %v848 = vunpack.c.l.b16 %v830
        %v849 = vunpack.c.h.b16 %v830
        %v850 = vunpack.c.l.b16 %v831
        %v851 = vunpack.c.h.b16 %v831
        %v852 = vunpack.c.l.b16 %v832
        %v853 = vunpack.c.h.b16 %v832
        %v854 = vunpack.c.l.b16 %v833
        %v855 = vunpack.c.h.b16 %v833
        %v856 = vunpack.c.l.b16 %v834
        %v857 = vunpack.c.h.b16 %v834
        %v858 = vunpack.c.l.b16 %v835
        %v859 = vunpack.c.h.b16 %v835
        %v860 = vpack.c.b16 %v844, %v844
        %v861 = vpack.c.b16 %v845, %v845
        %v862 = vpack.c.b16 %v846, %v846
        %v863 = vpack.c.b16 %v847, %v847
        %v864 = vpack.c.b16 %v848, %v848
        %v865 = vpack.c.b16 %v849, %v849
        %v866 = vpack.c.b16 %v850, %v850
        %v867 = vpack.c.b16 %v851, %v851
        %v868 = vpack.c.b16 %v852, %v852
        %v869 = vpack.c.b16 %v853, %v853
        %v870 = vpack.c.b16 %v854, %v854
        %v871 = vpack.c.b16 %v855, %v855
        %v872 = vpack.c.b16 %v856, %v856
        %v873 = vpack.c.b16 %v857, %v857
        %v874 = vpack.c.b16 %v858, %v858
        %v875 = vpack.c.b16 %v859, %v859
        %892 = vst [vmem:[%s268] sm:$0xf] %v860
        %893 = vst [vmem:[%s268 + $0x4] sm:$0xf] %v861
        %894 = vst [vmem:[%s268 + $0x8] sm:$0xf] %v862
        %895 = vst [vmem:[%s268 + $0xc] sm:$0xf] %v863
        %896 = vst [vmem:[%s268 + $0x10] sm:$0xf] %v864
        %897 = vst [vmem:[%s268 + $0x14] sm:$0xf] %v865
        %898 = vst [vmem:[%s268 + $0x18] sm:$0xf] %v866
        %899 = vst [vmem:[%s268 + $0x1c] sm:$0xf] %v867
        %900 = vst [vmem:[%s268 + $0x20] sm:$0xf] %v868
        %901 = vst [vmem:[%s268 + $0x24] sm:$0xf] %v869
        %902 = vst [vmem:[%s268 + $0x28] sm:$0xf] %v870
        %903 = vst [vmem:[%s268 + $0x2c] sm:$0xf] %v871
        %904 = vst [vmem:[%s268 + $0x30] sm:$0xf] %v872
        %905 = vst [vmem:[%s268 + $0x34] sm:$0xf] %v873
        %906 = vst [vmem:[%s268 + $0x38] sm:$0xf] %v874
        %907 = vst [vmem:[%s268 + $0x3c] sm:$0xf] %v875
        %v908 = vpack.c.bf16 %v673, %v670
        %v909 = vpack.c.bf16 %v681, %v678
        %v910 = vpack.c.bf16 %v689, %v686
        %v911 = vpack.c.bf16 %v697, %v694
        %v912 = vpack.c.bf16 %v705, %v702
        %v913 = vpack.c.bf16 %v713, %v710
        %v914 = vpack.c.bf16 %v721, %v718
        %v915 = vpack.c.bf16 %v729, %v726
        %v924 = vunpack.c.l.b16 %v908
        %v925 = vunpack.c.h.b16 %v908
        %v926 = vunpack.c.l.b16 %v909
        %v927 = vunpack.c.h.b16 %v909
        %v928 = vunpack.c.l.b16 %v910
        %v929 = vunpack.c.h.b16 %v910
        %v930 = vunpack.c.l.b16 %v911
        %v931 = vunpack.c.h.b16 %v911
        %v932 = vunpack.c.l.b16 %v912
        %v933 = vunpack.c.h.b16 %v912
        %v934 = vunpack.c.l.b16 %v913
        %v935 = vunpack.c.h.b16 %v913
        %v936 = vunpack.c.l.b16 %v914
        %v937 = vunpack.c.h.b16 %v914
        %v938 = vunpack.c.l.b16 %v915
        %v939 = vunpack.c.h.b16 %v915
        %v940 = vpack.c.b16 %v924, %v924
        %v941 = vpack.c.b16 %v925, %v925
        %v942 = vpack.c.b16 %v926, %v926
        %v943 = vpack.c.b16 %v927, %v927
        %v944 = vpack.c.b16 %v928, %v928
        %v945 = vpack.c.b16 %v929, %v929
        %v946 = vpack.c.b16 %v930, %v930
        %v947 = vpack.c.b16 %v931, %v931
        %v948 = vpack.c.b16 %v932, %v932
        %v949 = vpack.c.b16 %v933, %v933
        %v950 = vpack.c.b16 %v934, %v934
        %v951 = vpack.c.b16 %v935, %v935
        %v952 = vpack.c.b16 %v936, %v936
        %v953 = vpack.c.b16 %v937, %v937
        %v954 = vpack.c.b16 %v938, %v938
        %v955 = vpack.c.b16 %v939, %v939
        %972 = vst [vmem:[%s275] sm:$0xf] %v940
        %973 = vst [vmem:[%s275 + $0x4] sm:$0xf] %v941
        %974 = vst [vmem:[%s275 + $0x8] sm:$0xf] %v942
        %975 = vst [vmem:[%s275 + $0xc] sm:$0xf] %v943
        %976 = vst [vmem:[%s275 + $0x10] sm:$0xf] %v944
        %977 = vst [vmem:[%s275 + $0x14] sm:$0xf] %v945
        %978 = vst [vmem:[%s275 + $0x18] sm:$0xf] %v946
        %979 = vst [vmem:[%s275 + $0x1c] sm:$0xf] %v947
        %980 = vst [vmem:[%s275 + $0x20] sm:$0xf] %v948
        %981 = vst [vmem:[%s275 + $0x24] sm:$0xf] %v949
        %982 = vst [vmem:[%s275 + $0x28] sm:$0xf] %v950
        %983 = vst [vmem:[%s275 + $0x2c] sm:$0xf] %v951
        %984 = vst [vmem:[%s275 + $0x30] sm:$0xf] %v952
        %985 = vst [vmem:[%s275 + $0x34] sm:$0xf] %v953
        %986 = vst [vmem:[%s275 + $0x38] sm:$0xf] %v954
        %987 = vst [vmem:[%s275 + $0x3c] sm:$0xf] %v955
        %s988 = sand.u32 %s103, 1
        %s989 = scalar_lea.sflag [#allocation4], %s988
        %s990 = sand.u32 %s103, 1
        %s991 = smul.addr %s990, 64
        %s992 = scalar_lea.vmem [#allocation7], %s991
        %s993 = sand.u32 %s27, 1
        %s994 = scalar_lea.sflag [#allocation9], %s993
        %s995 = sand.u32 %s129, 1
        %s996 = smul.addr %s995, 64
        %s997 = scalar_lea.vmem [#allocation8], %s996
        %s998 = sand.u32 %s27, 1
        %s999 = scalar_lea.sflag [#allocation9], %s998
        %s1000 = sand.u32 %s155, 1
        %s1001 = smul.addr %s1000, 64
        %s1002 = scalar_lea.vmem [#allocation10], %s1001
        // Predicated region
        $region41: #{tpu_custom_call.1} parent=31 // pred_check
          %p1003 = pneg %p113
        $region42: #{tpu_custom_call.1} parent=31 // pred_check_branch
          %1005 = sbr.rel (%p1003) target = $region44
        $region43: #{tpu_custom_call.1} parent=31 // pred_region
          %s1006 = smul.u32 16, %s27
          %s1008 = ssub.s32 1024, 1024
          %1009 = vsyncadd %s989, %s1008
          %s1010 = smul.addr %s1006, 64
          %s1011 = scalar_lea.hbm %s3, %s1010
          %s1012 = sshll.u32 %s992, 4
          %s1013 = int_to_ptr.vmem [resolvable:$true] %s1012
          %1018 = dma.vmem_to_hbm [thread:$0]  %s1013, 1024, %s1011, %s989, 64, 64, 4
        $region44: #{tpu_custom_call.1} parent=31 // pred_fallthru
          _
        // Predicated region
        $region45: #{tpu_custom_call.1} parent=31 // pred_check
          %p1019 = pneg %p139
        $region46: #{tpu_custom_call.1} parent=31 // pred_check_branch
          %1021 = sbr.rel (%p1019) target = $region48
        $region47: #{tpu_custom_call.1} parent=31 // pred_region
          %s1022 = smul.u32 16, %s27
          %s1024 = ssub.s32 1024, 1024
          %1025 = vsyncadd %s994, %s1024
          %s1026 = smul.addr %s1022, 64
          %s1027 = scalar_lea.hbm %s4, %s1026
          %s1028 = sshll.u32 %s997, 4
          %s1029 = int_to_ptr.vmem [resolvable:$true] %s1028
          %1034 = dma.vmem_to_hbm [thread:$0]  %s1029, 1024, %s1027, %s994, 64, 64, 4
        $region48: #{tpu_custom_call.1} parent=31 // pred_fallthru
          _
        // Predicated region
        $region49: #{tpu_custom_call.1} parent=31 // pred_check
          %p1035 = pneg %p165
        $region50: #{tpu_custom_call.1} parent=31 // pred_check_branch
          %1037 = sbr.rel (%p1035) target = $region52
        $region51: #{tpu_custom_call.1} parent=31 // pred_region
          %s1038 = smul.u32 16, %s27
          %s1040 = ssub.s32 1024, 1024
          %1041 = vsyncadd %s999, %s1040
          %s1042 = smul.addr %s1038, 64
          %s1043 = scalar_lea.hbm %s5, %s1042
          %s1044 = sshll.u32 %s1002, 4
          %s1045 = int_to_ptr.vmem [resolvable:$true] %s1044
          %1050 = dma.vmem_to_hbm [thread:$0]  %s1045, 1024, %s1043, %s999, 64, 64, 4
        $region52: #{tpu_custom_call.1} parent=31 // pred_fallthru
          _
      $region32: #{tpu_custom_call.1} parent=5 // pred_fallthru
        _
      %p1051 = scmp.le.s32.totalorder 2, %s22
      // Predicated region
      $region53: #{tpu_custom_call.1} parent=5 // pred_check
        %p1052 = pneg %p1051
      $region54: #{tpu_custom_call.1} parent=5 // pred_check_branch
        %1054 = sbr.rel (%p1052) target = $region56
      $region55: #{tpu_custom_call.1} parent=5 // pred_region
        %s1055 = ssub.s32 %s22, 2
        // Predicated region
        $region57: #{tpu_custom_call.1} parent=55 // pred_check
          %p1056 = pneg %p119
        $region58: #{tpu_custom_call.1} parent=55 // pred_check_branch
          %1058 = sbr.rel (%p1056) target = $region60
        $region59: #{tpu_custom_call.1} parent=55 // pred_region
          %s1059 = sand.u32 %s104, 1
          %s1060 = scalar_lea.sflag [#allocation4], %s1059
          %s1061 = sand.u32 %s104, 1
          %s1062 = smul.addr %s1061, 64
          %s1063 = scalar_lea.vmem [#allocation7], %s1062
          %1064 = dma.done %s1060, 1024
        $region60: #{tpu_custom_call.1} parent=55 // pred_fallthru
          _
        // Predicated region
        $region61: #{tpu_custom_call.1} parent=55 // pred_check
          %p1065 = pneg %p145
        $region62: #{tpu_custom_call.1} parent=55 // pred_check_branch
          %1067 = sbr.rel (%p1065) target = $region64
        $region63: #{tpu_custom_call.1} parent=55 // pred_region
          %s1068 = sand.u32 %s28, 1
          %s1069 = scalar_lea.sflag [#allocation9], %s1068
          %s1070 = sand.u32 %s130, 1
          %s1071 = smul.addr %s1070, 64
          %s1072 = scalar_lea.vmem [#allocation8], %s1071
          %1073 = dma.done %s1069, 1024
        $region64: #{tpu_custom_call.1} parent=55 // pred_fallthru
          _
        // Predicated region
        $region65: #{tpu_custom_call.1} parent=55 // pred_check
          %p1074 = pneg %p171
        $region66: #{tpu_custom_call.1} parent=55 // pred_check_branch
          %1076 = sbr.rel (%p1074) target = $region68
        $region67: #{tpu_custom_call.1} parent=55 // pred_region
          %s1077 = sand.u32 %s28, 1
          %s1078 = scalar_lea.sflag [#allocation9], %s1077
          %s1079 = sand.u32 %s156, 1
          %s1080 = smul.addr %s1079, 64
          %s1081 = scalar_lea.vmem [#allocation10], %s1080
          %1082 = dma.done %s1078, 1024
        $region68: #{tpu_custom_call.1} parent=55 // pred_fallthru
          _
      $region56: #{tpu_custom_call.1} parent=5 // pred_fallthru
        _
    $region6: #{tpu_custom_call.1} parent=1 // loop_footer
      %s26 = sadd.s32 1, %s22
    $region7: #{tpu_custom_call.1} parent=1 // loop_footer_branch
      %21 = sbr.rel target = $region3
    $region8: #{tpu_custom_call.1} parent=1 // loop_exit
      _
    %1083 = vsyncpa [#allocation3], 1
    %s1084 = scalar_lea.sflag [#allocation3], 1
    %1085 = vsyncpa %s1084, 1
    %1086 = vsyncpa [#allocation6], 1
    %1087 = vsyncpa [#allocation4], 1
    %s1088 = scalar_lea.sflag [#allocation4], 1
    %1089 = vsyncpa %s1088, 1
    %1090 = vsyncpa [#allocation9], 1
    %s1091 = scalar_lea.sflag [#allocation9], 1
    %1092 = vsyncpa %s1091, 1

</llo_original>
